<compile_context>
chip_gen: v5e
topology: v5e:2x2
jax: 0.10.0
libtpu: 0.0.40
codegen_flags: <defaults>
</compile_context>

<pallas_src>
import jax
import jax.numpy as jnp
from jax.experimental import pallas as pl
from jax.experimental.pallas import tpu as pltpu

LANE = 128
SUBLANE = 8
NEG_INF = -1e30  # softmax mask for padded output lanes (exp underflows to 0)


def _round_up(n, m):
    return ((n + m - 1) // m) * m


def actor_kernel(x_ref, w1_ref, w2_ref, w3_ref, b_ref, o_ref):
    hidden = w1_ref.shape[1]
    out_p = w3_ref.shape[1]
    b1 = b_ref[0:1, :hidden]
    b2 = b_ref[1:2, :hidden]
    b3 = b_ref[2:3, :out_p]

    # fc1 + ReLU
    h1 = jnp.dot(x_ref[...], w1_ref[...], preferred_element_type=jnp.float32)
    h1 = jnp.maximum(h1 + b1, 0.0)
    # fc2 + ReLU
    h2 = jnp.dot(h1, w2_ref[...], preferred_element_type=jnp.float32)
    h2 = jnp.maximum(h2 + b2, 0.0)
    # fc3 (padded output lanes carry bias -1e30 -> zero probability)
    logits = jnp.dot(h2, w3_ref[...], preferred_element_type=jnp.float32) + b3
    # numerically stable softmax over the (lane-dense, padded) last dim
    m = jnp.max(logits, axis=-1, keepdims=True)
    e = jnp.exp(logits - m)
    p = e * pl.reciprocal(jnp.sum(e, axis=-1, keepdims=True), approx=False)
    # (x + 1) / 2
    o_ref[...] = ((p + 1.0) * 0.5).astype(o_ref.dtype)


def actor_forward(x, padded_params, out_dim, tile_m=256):
    """x: [batch, input_dim] float32; padded_params from prepare_params."""
    w1p, w2, w3p, b_all = padded_params
    batch, in_dim = x.shape
    in_p, hidden = w1p.shape
    out_p = w3p.shape[1]
    bias_w = b_all.shape[1]

    # Batch tile: multiple of 8, capped at tile_m; safe for v7x's 64 MiB VMEM.
    tm = min(tile_m, _round_up(batch, SUBLANE))
    batch_p = _round_up(batch, tm)
    grid = (batch_p // tm,)

    # Pad batch rows (zeros) and K lanes (zeros) once in the wrapper.
    x_p = jnp.pad(x, ((0, batch_p - batch), (0, in_p - in_dim)))

    flops = 2 * batch_p * (in_p * hidden + hidden * hidden + hidden * out_p)
    bytes_accessed = 4 * (batch_p * (in_p + out_p)
                          + in_p * hidden + hidden * hidden + hidden * out_p
                          + 3 * bias_w)
    cost = pl.CostEstimate(flops=flops,
                           transcendentals=batch_p * out_p,
                           bytes_accessed=bytes_accessed)

    out_padded = pl.pallas_call(
        actor_kernel,
        out_shape=jax.ShapeDtypeStruct((batch_p, out_p), jnp.float32),
        grid=grid,
        in_specs=[
            pl.BlockSpec((tm, in_p), lambda i: (i, 0)),     # activations: tiled
            pl.BlockSpec((in_p, hidden), lambda i: (0, 0)),  # W1: resident
            pl.BlockSpec((hidden, hidden), lambda i: (0, 0)),  # W2: resident
            pl.BlockSpec((hidden, out_p), lambda i: (0, 0)),   # W3: resident
            pl.BlockSpec((3, bias_w), lambda i: (0, 0)),       # packed biases
        ],
        out_specs=pl.BlockSpec((tm, out_p), lambda i: (i, 0)),
        compiler_params=pltpu.CompilerParams(
            dimension_semantics=("parallel",)),
        cost_estimate=cost,
    )(x_p, w1p, w2, w3p, b_all)

    return out_padded[:batch, :out_dim]


def init_params(key, input_dim, hidden_dim, output_dim):
    """Deterministic init mimicking PyTorch nn.Linear default:
    U(-1/sqrt(fan_in), 1/sqrt(fan_in)). Weights stored as [in, out]."""
    def linear(key, fan_in, fan_out):
        kw, kb = jax.random.split(key)
        bound = 1.0 / jnp.sqrt(jnp.float32(fan_in))
        w = jax.random.uniform(kw, (fan_in, fan_out), jnp.float32, -bound, bound)
        b = jax.random.uniform(kb, (1, fan_out), jnp.float32, -bound, bound)
        return w, b

    k1, k2, k3 = jax.random.split(key, 3)
    w1, b1 = linear(k1, input_dim, hidden_dim)
    w2, b2 = linear(k2, hidden_dim, hidden_dim)
    w3, b3 = linear(k3, hidden_dim, output_dim)
    return (w1, b1, w2, b2, w3, b3)


def prepare_params(params):
    """One-time (outside the kernel / per-step path) weight preparation:
    pad K and N to multiples of 128, mask padded output lanes via bias=-1e30,
    and pack the three biases into a single lane-dense array."""
    w1, b1, w2, b2, w3, b3 = params
    in_dim, hidden = w1.shape
    out_dim = w3.shape[1]
    in_p = _round_up(in_dim, LANE)
    out_p = _round_up(out_dim, LANE)

    w1p = jnp.zeros((in_p, hidden), jnp.float32).at[:in_dim, :].set(w1)
    w3p = jnp.zeros((hidden, out_p), jnp.float32).at[:, :out_dim].set(w3)

    bias_w = max(hidden, out_p)
    b_all = jnp.zeros((3, bias_w), jnp.float32)
    b_all = b_all.at[0, :hidden].set(b1[0])
    b_all = b_all.at[1, :hidden].set(b2[0])
    b_all = b_all.at[2, :out_p].set(jnp.full((out_p,), NEG_INF, jnp.float32))
    b_all = b_all.at[2, :out_dim].set(b3[0])
    return (w1p, w2, w3p, b_all)


def actor_forward_ref(x, params):
    """Pure-JAX reference for correctness check (unpadded params)."""
    w1, b1, w2, b2, w3, b3 = params
    h1 = jnp.maximum(x @ w1 + b1, 0.0)
    h2 = jnp.maximum(h1 @ w2 + b2, 0.0)
    p = jax.nn.softmax(h2 @ w3 + b3, axis=-1)
    return (p + 1.0) / 2.0


if __name__ == "__main__":
    input_dim = 32
    hidden_dim = 128
    output_dim = 8

    key = jax.random.PRNGKey(0)
    kx, kp, kx2 = jax.random.split(key, 3)
    params = init_params(kp, input_dim, hidden_dim, output_dim)
    padded = prepare_params(params)

    # Small demo batch.
    batch = 8
    x = jax.random.normal(kx, (batch, input_dim), jnp.float32)
    out = jax.block_until_ready(actor_forward(x, padded, output_dim))
    ref = actor_forward_ref(x, params)
    assert out.shape == (batch, output_dim)
    assert jnp.allclose(out, ref, atol=1e-5, rtol=1e-5), (
        f"max abs err {jnp.max(jnp.abs(out - ref))}")

    # Secondary check exercising the tiled / ragged batch path (2 grid steps).
    batch2 = 300
    x2 = jax.random.normal(kx2, (batch2, input_dim), jnp.float32)
    out2 = jax.block_until_ready(actor_forward(x2, padded, output_dim))
    ref2 = actor_forward_ref(x2, params)
    assert out2.shape == (batch2, output_dim)
    assert jnp.allclose(out2, ref2, atol=1e-5, rtol=1e-5), (
        f"max abs err {jnp.max(jnp.abs(out2 - ref2))}")

    print("KERNEL_OK")
</pallas_src>

<mosaic_0001>
module attributes {stable_mosaic.version = 11 : i64} {
  func.func @actor_kernel(%arg0: i32, %arg1: memref<8x128xf32, #tpu.memory_space<vmem>>, %arg2: memref<128x128xf32, #tpu.memory_space<vmem>>, %arg3: memref<128x128xf32, #tpu.memory_space<vmem>>, %arg4: memref<128x128xf32, #tpu.memory_space<vmem>>, %arg5: memref<3x128xf32, #tpu.memory_space<vmem>>, %arg6: memref<8x128xf32, #tpu.memory_space<vmem>>) attributes {dimension_semantics = [#tpu.dimension_semantics<parallel>], iteration_bounds = array<i64: 1>, scalar_prefetch = 0 : i64, scratch_operands = 0 : i64, tpu.core_type = #tpu.core_type<tc>, window_params = [{transform_indices = @transform_0, window_bounds = array<i64: 8, 128>}, {pipeline_mode = #tpu.pipeline_mode<synchronous>, transform_indices = @transform_1, window_bounds = array<i64: 128, 128>}, {pipeline_mode = #tpu.pipeline_mode<synchronous>, transform_indices = @transform_2, window_bounds = array<i64: 128, 128>}, {pipeline_mode = #tpu.pipeline_mode<synchronous>, transform_indices = @transform_3, window_bounds = array<i64: 128, 128>}, {pipeline_mode = #tpu.pipeline_mode<synchronous>, transform_indices = @transform_4, window_bounds = array<i64: 3, 128>}, {transform_indices = @transform_5, window_bounds = array<i64: 8, 128>}]} {
    %c0 = arith.constant 0 : index
    %c0_0 = arith.constant 0 : index
    %0 = vector.load %arg5[%c0, %c0_0] : memref<3x128xf32, #tpu.memory_space<vmem>>, vector<1x128xf32>
    %c1 = arith.constant 1 : index
    %c0_1 = arith.constant 0 : index
    %1 = vector.load %arg5[%c1, %c0_1] : memref<3x128xf32, #tpu.memory_space<vmem>>, vector<1x128xf32>
    %c2 = arith.constant 2 : index
    %c0_2 = arith.constant 0 : index
    %2 = vector.load %arg5[%c2, %c0_2] : memref<3x128xf32, #tpu.memory_space<vmem>>, vector<1x128xf32>
    %c0_3 = arith.constant 0 : index
    %c0_4 = arith.constant 0 : index
    %3 = vector.load %arg1[%c0_3, %c0_4] : memref<8x128xf32, #tpu.memory_space<vmem>>, vector<8x128xf32>
    %c0_5 = arith.constant 0 : index
    %c0_6 = arith.constant 0 : index
    %4 = vector.load %arg2[%c0_5, %c0_6] : memref<128x128xf32, #tpu.memory_space<vmem>>, vector<128x128xf32>
    %cst = arith.constant dense<0.000000e+00> : vector<8x128xf32>
    %5 = tpu.matmul %3, %4, %cst {dimension_numbers = #tpu.dot_dimension_numbers<[1], [0], [0], [1], [0, 0, 1, 1], [], []>} : vector<8x128xf32>, vector<128x128xf32>, vector<8x128xf32> -> vector<8x128xf32>
    %6 = vector.broadcast %0 : vector<1x128xf32> to vector<8x128xf32>
    %7 = arith.addf %5, %6 : vector<8x128xf32>
    %cst_7 = arith.constant 0.000000e+00 : f32
    %8 = vector.broadcast %cst_7 : f32 to vector<8x128xf32>
    %9 = arith.maximumf %7, %8 : vector<8x128xf32>
    %c0_8 = arith.constant 0 : index
    %c0_9 = arith.constant 0 : index
    %10 = vector.load %arg3[%c0_8, %c0_9] : memref<128x128xf32, #tpu.memory_space<vmem>>, vector<128x128xf32>
    %cst_10 = arith.constant dense<0.000000e+00> : vector<8x128xf32>
    %11 = tpu.matmul %9, %10, %cst_10 {dimension_numbers = #tpu.dot_dimension_numbers<[1], [0], [0], [1], [0, 0, 1, 1], [], []>} : vector<8x128xf32>, vector<128x128xf32>, vector<8x128xf32> -> vector<8x128xf32>
    %12 = vector.broadcast %1 : vector<1x128xf32> to vector<8x128xf32>
    %13 = arith.addf %11, %12 : vector<8x128xf32>
    %cst_11 = arith.constant 0.000000e+00 : f32
    %14 = vector.broadcast %cst_11 : f32 to vector<8x128xf32>
    %15 = arith.maximumf %13, %14 : vector<8x128xf32>
    %c0_12 = arith.constant 0 : index
    %c0_13 = arith.constant 0 : index
    %16 = vector.load %arg4[%c0_12, %c0_13] : memref<128x128xf32, #tpu.memory_space<vmem>>, vector<128x128xf32>
    %cst_14 = arith.constant dense<0.000000e+00> : vector<8x128xf32>
    %17 = tpu.matmul %15, %16, %cst_14 {dimension_numbers = #tpu.dot_dimension_numbers<[1], [0], [0], [1], [0, 0, 1, 1], [], []>} : vector<8x128xf32>, vector<128x128xf32>, vector<8x128xf32> -> vector<8x128xf32>
    %18 = vector.broadcast %2 : vector<1x128xf32> to vector<8x128xf32>
    %19 = arith.addf %17, %18 : vector<8x128xf32>
    %cst_15 = arith.constant dense<0xFF800000> : vector<8xf32>
    %20 = vector.multi_reduction <maximumf>, %19, %cst_15 [1] : vector<8x128xf32> to vector<8xf32>
    %21 = vector.shape_cast %20 : vector<8xf32> to vector<8x1xf32>
    %22 = vector.broadcast %21 : vector<8x1xf32> to vector<8x128xf32>
    %23 = arith.subf %19, %22 : vector<8x128xf32>
    %24 = math.exp %23 : vector<8x128xf32>
    %cst_16 = arith.constant dense<0.000000e+00> : vector<8xf32>
    %25 = vector.multi_reduction <add>, %24, %cst_16 [1] : vector<8x128xf32> to vector<8xf32>
    %26 = vector.shape_cast %25 : vector<8xf32> to vector<8x1xf32>
    %27 = tpu.reciprocal %26 : vector<8x1xf32> -> vector<8x1xf32>
    %28 = vector.broadcast %27 : vector<8x1xf32> to vector<8x128xf32>
    %29 = arith.mulf %24, %28 : vector<8x128xf32>
    %cst_17 = arith.constant 1.000000e+00 : f32
    %30 = vector.broadcast %cst_17 : f32 to vector<8x128xf32>
    %31 = arith.addf %29, %30 : vector<8x128xf32>
    %cst_18 = arith.constant 5.000000e-01 : f32
    %32 = vector.broadcast %cst_18 : f32 to vector<8x128xf32>
    %33 = arith.mulf %31, %32 : vector<8x128xf32>
    %c0_19 = arith.constant 0 : index
    %c0_20 = arith.constant 0 : index
    %34 = vector.load %arg6[%c0_19, %c0_20] : memref<8x128xf32, #tpu.memory_space<vmem>>, vector<8x128xf32>
    tpu.vector_store %arg6[%c0_19, %c0_20], %33 {strides = array<i32>} : memref<8x128xf32, #tpu.memory_space<vmem>>, vector<8x128xf32>,
    return
  }
  func.func @transform_0(%arg0: i32) -> (i32, i32) {
    %c0_i32 = arith.constant 0 : i32
    %c0_i32_0 = arith.constant 0 : i32
    return %arg0, %c0_i32 : i32, i32
  }
  func.func @transform_1(%arg0: i32) -> (i32, i32) {
    %c0_i32 = arith.constant 0 : i32
    %c0_i32_0 = arith.constant 0 : i32
    %c0_i32_1 = arith.constant 0 : i32
    return %c0_i32, %c0_i32_0 : i32, i32
  }
  func.func @transform_2(%arg0: i32) -> (i32, i32) {
    %c0_i32 = arith.constant 0 : i32
    %c0_i32_0 = arith.constant 0 : i32
    %c0_i32_1 = arith.constant 0 : i32
    return %c0_i32, %c0_i32_0 : i32, i32
  }
  func.func @transform_3(%arg0: i32) -> (i32, i32) {
    %c0_i32 = arith.constant 0 : i32
    %c0_i32_0 = arith.constant 0 : i32
    %c0_i32_1 = arith.constant 0 : i32
    return %c0_i32, %c0_i32_0 : i32, i32
  }
  func.func @transform_4(%arg0: i32) -> (i32, i32) {
    %c0_i32 = arith.constant 0 : i32
    %c0_i32_0 = arith.constant 0 : i32
    %c0_i32_1 = arith.constant 0 : i32
    return %c0_i32, %c0_i32_0 : i32, i32
  }
  func.func @transform_5(%arg0: i32) -> (i32, i32) {
    %c0_i32 = arith.constant 0 : i32
    %c0_i32_0 = arith.constant 0 : i32
    return %arg0, %c0_i32 : i32, i32
  }
}

</mosaic_0001>

<llo_original>
// kernel: tpu_custom_call.1
$region0: #{tpu_custom_call.1}
  #allocation0 [shape = 'u32[]', space=smem, size = 0x4, offset = 0x4, fixed_abs, tag = 'smem constant byte address 0x4 - core index']
  #allocation1 [shape = 'u32[72,128]{1,0:T(1,128)}', space=vmem, size = 0x9000, scoped, tag = 'internal scratch']
  %s0 = inlined_call_operand.hbm [shape: f32[8,128], index: 0, kind: input, shape index: {}]
  %s1 = inlined_call_operand.hbm [shape: f32[128,128], index: 1, kind: input, shape index: {}]
  %s2 = inlined_call_operand.hbm [shape: f32[128,128], index: 2, kind: input, shape index: {}]
  %s3 = inlined_call_operand.hbm [shape: f32[128,128], index: 3, kind: input, shape index: {}]
  %s4 = inlined_call_operand.hbm [shape: f32[3,128], index: 4, kind: input, shape index: {}]
  %s5 = inlined_call_operand.hbm [shape: f32[8,128], index: 5, kind: output, shape index: {}]
  %s6 = sld [smem:[#allocation0]]
  $region50: #{tpu_custom_call.1} parent=0
    _
  %s8 = ssub.s32 1, %s6
  %s9 = scalar_select 0, %s8, %s6
  $region1: #{tpu_custom_call.1} parent=0
    #allocation2 [shape = 'u8[4096]{0}', space=vmem, size = 0x1000, scoped, tag = 'input window, operand 0, single buffered']
    #allocation3 [shape = 's32[1]{0}', space=sflag, size = 0x4, scoped, tag = 'scoped memory for tpu_custom_call.1']
    #allocation4 [shape = 's32[1]{0}', space=sflag, size = 0x4, scoped, tag = 'scoped memory for tpu_custom_call.1']
    #allocation5 [shape = 'u8[65536]{0}', space=vmem, size = 0x10000, scoped, tag = 'input window, operand 1, single buffered']
    #allocation6 [shape = 's32[1]{0}', space=sflag, size = 0x4, scoped, tag = 'scoped memory for tpu_custom_call.1']
    #allocation7 [shape = 'u8[65536]{0}', space=vmem, size = 0x10000, scoped, tag = 'input window, operand 2, single buffered']
    #allocation8 [shape = 'u8[65536]{0}', space=vmem, size = 0x10000, scoped, tag = 'input window, operand 3, single buffered']
    #allocation9 [shape = 's32[1]{0}', space=sflag, size = 0x4, scoped, tag = 'scoped memory for tpu_custom_call.1']
    #allocation10 [shape = 'u8[2048]{0}', space=vmem, size = 0x800, scoped, tag = 'input window, operand 4, single buffered']
    #allocation11 [shape = 'u8[4096]{0}', space=vmem, size = 0x1000, scoped, tag = 'output window, operand 0, single buffered']
    %10 = vsyncpa [#allocation3], 0
    %11 = vsyncpa [#allocation6], 0
    %12 = vsyncpa [#allocation9], 0
    %13 = vsyncpa [#allocation4], 0
    // Predicated region
    $region2: #{tpu_custom_call.1} parent=1 // pred_check
      _
    $region3: #{tpu_custom_call.1} parent=1 // pred_check_branch
      %15 = sbr.rel (0) target = $region5
    $region4: #{tpu_custom_call.1} parent=1 // pred_region
      %17 = vsyncadd [#allocation3], 0
      %s19 = sshll.u32 %s0, 4
      %s20 = int_to_ptr.hbm [resolvable:$true] %s19
      %s21 = sshll.u32 [#allocation2], 4
      %s22 = int_to_ptr.vmem [resolvable:$true] %s21
      %24 = dma.hbm_to_vmem [thread:$0]  %s20, 128, %s22, [#allocation3]
    $region5: #{tpu_custom_call.1} parent=1 // pred_fallthru
      _
    // Predicated region
    $region6: #{tpu_custom_call.1} parent=1 // pred_check
      _
    $region7: #{tpu_custom_call.1} parent=1 // pred_check_branch
      %26 = sbr.rel (0) target = $region9
    $region8: #{tpu_custom_call.1} parent=1 // pred_region
      %28 = vsyncadd [#allocation6], 0
      %s29 = sshll.u32 %s1, 4
      %s30 = int_to_ptr.hbm [resolvable:$true] %s29
      %s31 = sshll.u32 [#allocation5], 4
      %s32 = int_to_ptr.vmem [resolvable:$true] %s31
      %37 = dma.hbm_to_vmem [thread:$0]  %s30, 2048, %s32, [#allocation6], 128, 128, 8
    $region9: #{tpu_custom_call.1} parent=1 // pred_fallthru
      _
    // Predicated region
    $region10: #{tpu_custom_call.1} parent=1 // pred_check
      _
    $region11: #{tpu_custom_call.1} parent=1 // pred_check_branch
      %39 = sbr.rel (0) target = $region13
    $region12: #{tpu_custom_call.1} parent=1 // pred_region
      %41 = vsyncadd [#allocation6], 0
      %s42 = sshll.u32 %s2, 4
      %s43 = int_to_ptr.hbm [resolvable:$true] %s42
      %s44 = sshll.u32 [#allocation7], 4
      %s45 = int_to_ptr.vmem [resolvable:$true] %s44
      %50 = dma.hbm_to_vmem [thread:$0]  %s43, 2048, %s45, [#allocation6], 128, 128, 8
    $region13: #{tpu_custom_call.1} parent=1 // pred_fallthru
      _
    // Predicated region
    $region14: #{tpu_custom_call.1} parent=1 // pred_check
      _
    $region15: #{tpu_custom_call.1} parent=1 // pred_check_branch
      %52 = sbr.rel (0) target = $region17
    $region16: #{tpu_custom_call.1} parent=1 // pred_region
      %54 = vsyncadd [#allocation9], 0
      %s55 = sshll.u32 %s3, 4
      %s56 = int_to_ptr.hbm [resolvable:$true] %s55
      %s57 = sshll.u32 [#allocation8], 4
      %s58 = int_to_ptr.vmem [resolvable:$true] %s57
      %63 = dma.hbm_to_vmem [thread:$0]  %s56, 2048, %s58, [#allocation9], 128, 128, 8
    $region17: #{tpu_custom_call.1} parent=1 // pred_fallthru
      _
    // Predicated region
    $region18: #{tpu_custom_call.1} parent=1 // pred_check
      _
    $region19: #{tpu_custom_call.1} parent=1 // pred_check_branch
      %65 = sbr.rel (0) target = $region21
    $region20: #{tpu_custom_call.1} parent=1 // pred_region
      %67 = vsyncadd [#allocation9], 0
      %s69 = sshll.u32 %s4, 4
      %s70 = int_to_ptr.hbm [resolvable:$true] %s69
      %s71 = sshll.u32 [#allocation10], 4
      %s72 = int_to_ptr.vmem [resolvable:$true] %s71
      %74 = dma.hbm_to_vmem [thread:$0]  %s70, 64, %s72, [#allocation9]
    $region21: #{tpu_custom_call.1} parent=1 // pred_fallthru
      _
    // Predicated region
    $region22: #{tpu_custom_call.1} parent=1 // pred_check
      _
    $region23: #{tpu_custom_call.1} parent=1 // pred_check_branch
      %76 = sbr.rel (0) target = $region25
    $region24: #{tpu_custom_call.1} parent=1 // pred_region
      %78 = dma.done [#allocation3], 128
    $region25: #{tpu_custom_call.1} parent=1 // pred_fallthru
      _
    // Predicated region
    $region26: #{tpu_custom_call.1} parent=1 // pred_check
      _
    $region27: #{tpu_custom_call.1} parent=1 // pred_check_branch
      %80 = sbr.rel (0) target = $region29
    $region28: #{tpu_custom_call.1} parent=1 // pred_region
      %82 = dma.done [#allocation6], 2048
    $region29: #{tpu_custom_call.1} parent=1 // pred_fallthru
      _
    // Predicated region
    $region30: #{tpu_custom_call.1} parent=1 // pred_check
      _
    $region31: #{tpu_custom_call.1} parent=1 // pred_check_branch
      %84 = sbr.rel (0) target = $region33
    $region32: #{tpu_custom_call.1} parent=1 // pred_region
      %86 = dma.done [#allocation6], 2048
    $region33: #{tpu_custom_call.1} parent=1 // pred_fallthru
      _
    // Predicated region
    $region34: #{tpu_custom_call.1} parent=1 // pred_check
      _
    $region35: #{tpu_custom_call.1} parent=1 // pred_check_branch
      %88 = sbr.rel (0) target = $region37
    $region36: #{tpu_custom_call.1} parent=1 // pred_region
      %90 = dma.done [#allocation9], 2048
    $region37: #{tpu_custom_call.1} parent=1 // pred_fallthru
      _
    // Predicated region
    $region38: #{tpu_custom_call.1} parent=1 // pred_check
      _
    $region39: #{tpu_custom_call.1} parent=1 // pred_check_branch
      %92 = sbr.rel (0) target = $region41
    $region40: #{tpu_custom_call.1} parent=1 // pred_region
      %94 = dma.done [#allocation9], 64
    $region41: #{tpu_custom_call.1} parent=1 // pred_fallthru
      _
    %v95 = vld [vmem:[#allocation10] sm:$0x1]
    %v96 = vld [vmem:[#allocation10 + $0x1] sm:$0x1]
    %v97 = vld [vmem:[#allocation10 + $0x2] sm:$0x1]
    %v98 = vld [vmem:[#allocation2] sm:$0xff]
    %v99 = vld [vmem:[#allocation5] sm:$0xff]
    %v100 = vld [vmem:[#allocation5 + $0x8] sm:$0xff]
    %v101 = vld [vmem:[#allocation5 + $0x10] sm:$0xff]
    %v102 = vld [vmem:[#allocation5 + $0x18] sm:$0xff]
    %v103 = vld [vmem:[#allocation5 + $0x20] sm:$0xff]
    %v104 = vld [vmem:[#allocation5 + $0x28] sm:$0xff]
    %v105 = vld [vmem:[#allocation5 + $0x30] sm:$0xff]
    %v106 = vld [vmem:[#allocation5 + $0x38] sm:$0xff]
    %v107 = vld [vmem:[#allocation5 + $0x40] sm:$0xff]
    %v108 = vld [vmem:[#allocation5 + $0x48] sm:$0xff]
    %v109 = vld [vmem:[#allocation5 + $0x50] sm:$0xff]
    %v110 = vld [vmem:[#allocation5 + $0x58] sm:$0xff]
    %v111 = vld [vmem:[#allocation5 + $0x60] sm:$0xff]
    %v112 = vld [vmem:[#allocation5 + $0x68] sm:$0xff]
    %v113 = vld [vmem:[#allocation5 + $0x70] sm:$0xff]
    %v114 = vld [vmem:[#allocation5 + $0x78] sm:$0xff]
    %v115 = vperm.slane %v95, 0
    %116 = vmatpush.msra.mxu0 %v114
    %117 = vmatpush.msra.mxu0 %v113
    %118 = vmatpush.msra.mxu0 %v112
    %119 = vmatpush.msra.mxu0 %v111
    %120 = vmatpush.msra.mxu0 %v110
    %121 = vmatpush.msra.mxu0 %v109
    %122 = vmatpush.msra.mxu0 %v108
    %123 = vmatpush.msra.mxu0 %v107
    %124 = vmatpush.msra.mxu0 %v106
    %125 = vmatpush.msra.mxu0 %v105
    %126 = vmatpush.msra.mxu0 %v104
    %127 = vmatpush.msra.mxu0 %v103
    %128 = vmatpush.msra.mxu0 %v102
    %129 = vmatpush.msra.mxu0 %v101
    %130 = vmatpush.msra.mxu0 %v100
    %131 = vmatpush.msra.mxu0 %v99
    %132 = vmatmul.f32.gmra.mxu0 %v98
    %v133 = vpop.f32.mrf.mxu0
    %v134 = vadd.f32 %v115, %v133
    %135 = vdwg.mxu0
    %v136 = vmax.f32 %v134, 0.0
    %v137 = vld [vmem:[#allocation7] sm:$0xff]
    %v138 = vld [vmem:[#allocation7 + $0x8] sm:$0xff]
    %v139 = vld [vmem:[#allocation7 + $0x10] sm:$0xff]
    %v140 = vld [vmem:[#allocation7 + $0x18] sm:$0xff]
    %v141 = vld [vmem:[#allocation7 + $0x20] sm:$0xff]
    %v142 = vld [vmem:[#allocation7 + $0x28] sm:$0xff]
    %v143 = vld [vmem:[#allocation7 + $0x30] sm:$0xff]
    %v144 = vld [vmem:[#allocation7 + $0x38] sm:$0xff]
    %v145 = vld [vmem:[#allocation7 + $0x40] sm:$0xff]
    %v146 = vld [vmem:[#allocation7 + $0x48] sm:$0xff]
    %v147 = vld [vmem:[#allocation7 + $0x50] sm:$0xff]
    %v148 = vld [vmem:[#allocation7 + $0x58] sm:$0xff]
    %v149 = vld [vmem:[#allocation7 + $0x60] sm:$0xff]
    %v150 = vld [vmem:[#allocation7 + $0x68] sm:$0xff]
    %v151 = vld [vmem:[#allocation7 + $0x70] sm:$0xff]
    %v152 = vld [vmem:[#allocation7 + $0x78] sm:$0xff]
    %v153 = vperm.slane %v96, 0
    %154 = vmatpush.msra.mxu0 %v152
    %155 = vmatpush.msra.mxu0 %v151
    %156 = vmatpush.msra.mxu0 %v150
    %157 = vmatpush.msra.mxu0 %v149
    %158 = vmatpush.msra.mxu0 %v148
    %159 = vmatpush.msra.mxu0 %v147
    %160 = vmatpush.msra.mxu0 %v146
    %161 = vmatpush.msra.mxu0 %v145
    %162 = vmatpush.msra.mxu0 %v144
    %163 = vmatpush.msra.mxu0 %v143
    %164 = vmatpush.msra.mxu0 %v142
    %165 = vmatpush.msra.mxu0 %v141
    %166 = vmatpush.msra.mxu0 %v140
    %167 = vmatpush.msra.mxu0 %v139
    %168 = vmatpush.msra.mxu0 %v138
    %169 = vmatpush.msra.mxu0 %v137
    %170 = vmatmul.f32.gmra.mxu0 %v136
    %v171 = vpop.f32.mrf.mxu0
    %v172 = vadd.f32 %v153, %v171
    %173 = vdwg.mxu0
    %v174 = vmax.f32 %v172, 0.0
    %v175 = vld [vmem:[#allocation8] sm:$0xff]
    %v176 = vld [vmem:[#allocation8 + $0x8] sm:$0xff]
    %v177 = vld [vmem:[#allocation8 + $0x10] sm:$0xff]
    %v178 = vld [vmem:[#allocation8 + $0x18] sm:$0xff]
    %v179 = vld [vmem:[#allocation8 + $0x20] sm:$0xff]
    %v180 = vld [vmem:[#allocation8 + $0x28] sm:$0xff]
    %v181 = vld [vmem:[#allocation8 + $0x30] sm:$0xff]
    %v182 = vld [vmem:[#allocation8 + $0x38] sm:$0xff]
    %v183 = vld [vmem:[#allocation8 + $0x40] sm:$0xff]
    %v184 = vld [vmem:[#allocation8 + $0x48] sm:$0xff]
    %v185 = vld [vmem:[#allocation8 + $0x50] sm:$0xff]
    %v186 = vld [vmem:[#allocation8 + $0x58] sm:$0xff]
    %v187 = vld [vmem:[#allocation8 + $0x60] sm:$0xff]
    %v188 = vld [vmem:[#allocation8 + $0x68] sm:$0xff]
    %v189 = vld [vmem:[#allocation8 + $0x70] sm:$0xff]
    %v190 = vld [vmem:[#allocation8 + $0x78] sm:$0xff]
    %v191 = vperm.slane %v97, 0
    %192 = vmatpush.msra.mxu0 %v190
    %193 = vmatpush.msra.mxu0 %v189
    %194 = vmatpush.msra.mxu0 %v188
    %195 = vmatpush.msra.mxu0 %v187
    %196 = vmatpush.msra.mxu0 %v186
    %197 = vmatpush.msra.mxu0 %v185
    %198 = vmatpush.msra.mxu0 %v184
    %199 = vmatpush.msra.mxu0 %v183
    %200 = vmatpush.msra.mxu0 %v182
    %201 = vmatpush.msra.mxu0 %v181
    %202 = vmatpush.msra.mxu0 %v180
    %203 = vmatpush.msra.mxu0 %v179
    %204 = vmatpush.msra.mxu0 %v178
    %205 = vmatpush.msra.mxu0 %v177
    %206 = vmatpush.msra.mxu0 %v176
    %207 = vmatpush.msra.mxu0 %v175
    %208 = vmatmul.f32.gmra.mxu0 %v174
    %v209 = vpop.f32.mrf.mxu0
    %v210 = vadd.f32 %v191, %v209
    %211 = vdwg.mxu0
    %212 = vmax.xlane.f32.xlu0 %v210
    %v213 = vpop.xlane.xlu0 %212
    %v214 = vsub.f32 %v210, %v213
    %v215 = vmul.f32 %v214, 1.442695
    %v216 = vpow.pop %v215
    %217 = vadd.xlane.f32.xlu0 %v216
    %v218 = vpop.xlane.xlu0 %217
    %v219 = vrcp.pop %v218
    %v220 = vmul.f32 %v218, %v219
    %v221 = vsub.f32 1.0, %v220
    %v222 = vmul.f32 %v219, %v221
    %v223 = vadd.f32 %v219, %v222
    %vm224 = vweird.f32 %v218
    %vm225 = vweird.f32 %v219
    %vm226 = vmor %vm224, %vm225
    %v227 = vsel %vm226, %v219, %v223
    %v228 = vand.u32 2147483647, %v218
    %vm229 = vcmp.eq.f32.partialorder %v228, 8.507059e+37
    %v230 = vand.u32 %v218, 2147483648
    %v231 = vor.u32 1.1754944e-38, %v230
    %v232 = vsel %vm229, %v231, %v227
    %v233 = vmul.f32 %v216, %v232
    %v234 = vadd.f32 %v233, 1.0
    %v235 = vmul.f32 %v234, 0.5
    %236 = vst [vmem:[#allocation11] sm:$0xff] %v235
    // Predicated region
    $region42: #{tpu_custom_call.1} parent=1 // pred_check
      _
    $region43: #{tpu_custom_call.1} parent=1 // pred_check_branch
      %238 = sbr.rel (0) target = $region45
    $region44: #{tpu_custom_call.1} parent=1 // pred_region
      %240 = vsyncadd [#allocation4], 0
      %s242 = sshll.u32 [#allocation11], 4
      %s243 = int_to_ptr.vmem [resolvable:$true] %s242
      %s244 = sshll.u32 %s5, 4
      %s245 = int_to_ptr.hbm [resolvable:$true] %s244
      %247 = dma.vmem_to_hbm [thread:$0]  %s243, 128, %s245, [#allocation4]
    $region45: #{tpu_custom_call.1} parent=1 // pred_fallthru
      _
    // Predicated region
    $region46: #{tpu_custom_call.1} parent=1 // pred_check
      _
    $region47: #{tpu_custom_call.1} parent=1 // pred_check_branch
      %249 = sbr.rel (0) target = $region49
    $region48: #{tpu_custom_call.1} parent=1 // pred_region
      %251 = dma.done [#allocation4], 128
    $region49: #{tpu_custom_call.1} parent=1 // pred_fallthru
      _
    %252 = vsyncpa [#allocation3], 1
    %253 = vsyncpa [#allocation6], 1
    %254 = vsyncpa [#allocation9], 1
    %255 = vsyncpa [#allocation4], 1

</llo_original>
